<compile_context>
chip_gen: v7x
topology: tpu7x:2x2x1
jax: 0.10.0
libtpu: 0.0.40
codegen_flags: <defaults>
</compile_context>

<pallas_src>
import functools

import jax
import jax.numpy as jnp
from jax import lax
from jax.experimental import pallas as pl
from jax.experimental.pallas import tpu as pltpu


def _rmsnorm_kernel(x_ref, w_ref, o_ref, *, eps):
    w = w_ref[...]                                   # (1, dim), VMEM-resident
    x = x_ref[...].astype(jnp.float32)               # x.float()
    ms = jnp.mean(x * x, axis=-1, keepdims=True)     # mean over last dim
    normed = x * lax.rsqrt(ms + eps)                 # EUP rsqrt
    # .type_as(x) then * weight, exactly like the torch forward; o_ref.dtype
    # controls the writeback width.
    o_ref[...] = (normed.astype(x_ref.dtype) * w).astype(o_ref.dtype)


def _round_up(n, m):
    return ((n + m - 1) // m) * m


def _vmem_capacity_bytes(default_bytes=64 << 20):
    """Per-core VMEM capacity; conservative (v7x-sized) fallback."""
    try:
        cap = getattr(pltpu.get_tpu_info(), "vmem_capacity_bytes", None)
        if cap:
            return int(cap)
    except Exception:
        pass
    return default_bytes


def _pick_row_tile(rows, dim, in_itemsize, out_itemsize, budget_bytes):
    # Sublane multiple for full vreg occupancy (8 f32 / 16 bf16 / 32 int8-fp8).
    sub = {4: 8, 2: 16, 1: 32}
    mult = max(sub.get(in_itemsize, 8), sub.get(out_itemsize, 8))
    lanes = max(dim, 128)                               # lane padding for tiny dims
    per_row = 2 * lanes * (in_itemsize + out_itemsize)  # x2: double-buffered in+out
    max_rows = max(mult, (budget_bytes // per_row) // mult * mult)
    tile = int(min(max_rows, 1024, _round_up(rows, mult)))
    # Keep several grid steps so v7x's two TensorCores both get work.
    min_steps = 4
    if rows >= min_steps * mult and pl.cdiv(rows, tile) < min_steps:
        tile = max(mult, _round_up(pl.cdiv(rows, min_steps), mult))
    return tile, mult


def rmsnorm(x, weight, eps: float, *, out_dtype=None):
    """x: [..., dim]; weight: [dim].

    Default out_dtype reproduces torch promotion (bf16 x * f32 weight -> f32).
    Pass out_dtype=x.dtype for low-precision activations to cut HBM writeback.
    """
    orig_shape = x.shape
    dim = orig_shape[-1]
    x2d = x.reshape(-1, dim)
    rows = x2d.shape[0]

    if out_dtype is None:
        out_dtype = jnp.promote_types(x.dtype, weight.dtype)
    out_dtype = jnp.dtype(out_dtype)

    in_itemsize = jnp.dtype(x.dtype).itemsize
    out_itemsize = out_dtype.itemsize
    w_bytes = weight.size * jnp.dtype(weight.dtype).itemsize

    vmem_cap = _vmem_capacity_bytes()
    tile_budget = max(int(vmem_cap * 0.55) - w_bytes, 1 << 20)
    row_tile, _ = _pick_row_tile(rows, dim, in_itemsize, out_itemsize, tile_budget)

    # Pad rows to the tile instead of asserting divisibility; padded rows only
    # compute rsqrt(eps) on zeros (finite) and are sliced off afterwards.
    rows_padded = _round_up(rows, row_tile)
    if rows_padded != rows:
        x2d = jnp.pad(x2d, ((0, rows_padded - rows), (0, 0)))

    w2d = weight.reshape(1, dim)
    grid = (rows_padded // row_tile,)

    lanes = max(dim, 128)
    in_tile_bytes = row_tile * lanes * in_itemsize
    out_tile_bytes = row_tile * lanes * out_itemsize
    need = 2 * (in_tile_bytes + out_tile_bytes) + w_bytes
    vmem_limit = int(min(vmem_cap - (8 << 20),
                         max(need + (4 << 20), 16 << 20)))

    cost = pl.CostEstimate(
        flops=3 * rows * dim,
        transcendentals=rows,
        bytes_accessed=rows * dim * (in_itemsize + out_itemsize) + w_bytes,
    )

    out = pl.pallas_call(
        functools.partial(_rmsnorm_kernel, eps=eps),
        out_shape=jax.ShapeDtypeStruct((rows_padded, dim), out_dtype),
        grid_spec=pltpu.PrefetchScalarGridSpec(
            num_scalar_prefetch=0,
            grid=grid,
            in_specs=[
                pl.BlockSpec((row_tile, dim), lambda i: (i, 0)),
                pl.BlockSpec((1, dim), lambda i: (0, 0)),   # weight stays resident
            ],
            out_specs=pl.BlockSpec((row_tile, dim), lambda i: (i, 0)),
        ),
        compiler_params=pltpu.CompilerParams(
            dimension_semantics=("parallel",),
            vmem_limit_bytes=vmem_limit,
        ),
        cost_estimate=cost,
    )(x2d, w2d)

    if rows_padded != rows:
        out = out[:rows]
    return out.reshape(orig_shape[:-1] + (dim,))


def rmsnorm_ref(x, weight, eps: float):
    xf = x.astype(jnp.float32)
    normed = xf * lax.rsqrt(jnp.mean(xf * xf, axis=-1, keepdims=True) + eps)
    return normed.astype(x.dtype) * weight


if __name__ == "__main__":
    eps = 1e-6
    batch, seq, dim = 2, 8, 32

    key = jax.random.PRNGKey(0)
    x = jax.random.normal(key, (batch, seq, dim), dtype=jnp.float32)
    # Deterministic parameter init matching nn.Parameter(torch.ones(dim)).
    weight = jnp.ones((dim,), dtype=jnp.float32)

    out = jax.block_until_ready(rmsnorm(x, weight, eps))
    ref = rmsnorm_ref(x, weight, eps)
    assert out.shape == x.shape, (out.shape, x.shape)
    assert out.dtype == ref.dtype, (out.dtype, ref.dtype)
    assert jnp.allclose(out, ref, atol=1e-5, rtol=1e-5), "f32 mismatch vs reference"

    # bf16 path with out_dtype=x.dtype (halves HBM writeback vs f32 promotion).
    xb = x.astype(jnp.bfloat16)
    wb = jnp.ones((dim,), dtype=jnp.bfloat16)
    outb = jax.block_until_ready(rmsnorm(xb, wb, eps, out_dtype=jnp.bfloat16))
    refb = rmsnorm_ref(xb, wb, eps)
    assert outb.dtype == jnp.bfloat16, outb.dtype
    assert jnp.allclose(outb.astype(jnp.float32), refb.astype(jnp.float32),
                        atol=2e-2, rtol=2e-2), "bf16 mismatch vs reference"

    print("KERNEL_OK")
</pallas_src>

<mosaic_0001>
module attributes {stable_mosaic.version = 11 : i64} {
  func.func @_rmsnorm_kernel(%arg0: i32, %arg1: memref<16x32xf32, #tpu.memory_space<vmem>>, %arg2: memref<1x32xf32, #tpu.memory_space<vmem>>, %arg3: memref<16x32xf32, #tpu.memory_space<vmem>>) attributes {dimension_semantics = [#tpu.dimension_semantics<parallel>], iteration_bounds = array<i64: 1>, scalar_prefetch = 0 : i64, scratch_operands = 0 : i64, tpu.core_type = #tpu.core_type<tc>, window_params = [{transform_indices = @transform_0, window_bounds = array<i64: 16, 32>}, {pipeline_mode = #tpu.pipeline_mode<synchronous>, transform_indices = @transform_1, window_bounds = array<i64: 1, 32>}, {transform_indices = @transform_2, window_bounds = array<i64: 16, 32>}]} {
    %c0 = arith.constant 0 : index
    %c0_0 = arith.constant 0 : index
    %0 = vector.load %arg2[%c0, %c0_0] : memref<1x32xf32, #tpu.memory_space<vmem>>, vector<1x32xf32>
    %c0_1 = arith.constant 0 : index
    %c0_2 = arith.constant 0 : index
    %1 = vector.load %arg1[%c0_1, %c0_2] : memref<16x32xf32, #tpu.memory_space<vmem>>, vector<16x32xf32>
    %2 = arith.mulf %1, %1 : vector<16x32xf32>
    %cst = arith.constant dense<0.000000e+00> : vector<16xf32>
    %3 = vector.multi_reduction <add>, %2, %cst [1] : vector<16x32xf32> to vector<16xf32>
    %4 = vector.shape_cast %3 : vector<16xf32> to vector<16x1xf32>
    %cst_3 = arith.constant 3.200000e+01 : f32
    %5 = vector.broadcast %cst_3 : f32 to vector<16x1xf32>
    %6 = arith.divf %4, %5 : vector<16x1xf32>
    %cst_4 = arith.constant 9.99999997E-7 : f32
    %7 = vector.broadcast %cst_4 : f32 to vector<16x1xf32>
    %8 = arith.addf %6, %7 : vector<16x1xf32>
    %9 = math.rsqrt %8 : vector<16x1xf32>
    %10 = vector.broadcast %9 : vector<16x1xf32> to vector<16x32xf32>
    %11 = arith.mulf %1, %10 : vector<16x32xf32>
    %12 = vector.broadcast %0 : vector<1x32xf32> to vector<16x32xf32>
    %13 = arith.mulf %11, %12 : vector<16x32xf32>
    %c0_5 = arith.constant 0 : index
    %c0_6 = arith.constant 0 : index
    %14 = vector.load %arg3[%c0_5, %c0_6] : memref<16x32xf32, #tpu.memory_space<vmem>>, vector<16x32xf32>
    tpu.vector_store %arg3[%c0_5, %c0_6], %13 {strides = array<i32>} : memref<16x32xf32, #tpu.memory_space<vmem>>, vector<16x32xf32>,
    return
  }
  func.func @transform_0(%arg0: i32) -> (i32, i32) {
    %c0_i32 = arith.constant 0 : i32
    %c0_i32_0 = arith.constant 0 : i32
    return %arg0, %c0_i32 : i32, i32
  }
  func.func @transform_1(%arg0: i32) -> (i32, i32) {
    %c0_i32 = arith.constant 0 : i32
    %c0_i32_0 = arith.constant 0 : i32
    %c0_i32_1 = arith.constant 0 : i32
    return %c0_i32, %c0_i32_0 : i32, i32
  }
  func.func @transform_2(%arg0: i32) -> (i32, i32) {
    %c0_i32 = arith.constant 0 : i32
    %c0_i32_0 = arith.constant 0 : i32
    return %arg0, %c0_i32 : i32, i32
  }
}

</mosaic_0001>

<llo_original>
// kernel: tpu_custom_call.1
$region0: #{tpu_custom_call.1}
  #allocation0 [shape = 'u32[]', space=smem, size = 0x4, offset = 0x4, fixed_abs, tag = 'smem constant byte address 0x4 - core index']
  #allocation1 [shape = 'u32[144,128]{1,0:T(1,128)}', space=vmem, size = 0x12000, scoped, tag = 'internal scratch']
  %s0 = inlined_call_operand.hbm [shape: f32[16,32], index: 0, kind: input, shape index: {}]
  %s1 = inlined_call_operand.vmem [shape: f32[1,32], index: 1, kind: input, shape index: {}]
  %s2 = inlined_call_operand.hbm [shape: f32[16,32], index: 2, kind: output, shape index: {}]
  %s3 = sld [smem:[#allocation0]]
  $region22: #{tpu_custom_call.1} parent=0
    _
  %s5 = ssub.s32 1, %s3
  %s6 = scalar_select 0, %s5, %s3
  $region1: #{tpu_custom_call.1} parent=0
    #allocation2 [shape = 'u8[8192]{0}', space=vmem, size = 0x2000, scoped, tag = 'input window, operand 0, single buffered']
    #allocation3 [shape = 's32[1]{0}', space=sflag, size = 0x4, scoped, tag = 'scoped memory for tpu_custom_call.1']
    #allocation4 [shape = 's32[1]{0}', space=sflag, size = 0x4, scoped, tag = 'scoped memory for tpu_custom_call.1']
    #allocation5 [shape = 'u8[8192]{0}', space=vmem, size = 0x2000, scoped, tag = 'output window, operand 0, single buffered']
    %7 = vsyncpa [#allocation3], 0
    %8 = vsyncpa [#allocation4], 0
    // Predicated region
    $region2: #{tpu_custom_call.1} parent=1 // pred_check
      _
    $region3: #{tpu_custom_call.1} parent=1 // pred_check_branch
      %10 = sbr.rel (0) target = $region5
    $region4: #{tpu_custom_call.1} parent=1 // pred_region
      %s12 = ssub.s32 256, 256
      %13 = vsyncadd [#allocation3], %s12
      %s14 = sshll.u32 [#allocation2], 4
      %s15 = int_to_ptr.vmem [resolvable:$true] %s14
      %20 = dma.hbm_to_vmem [thread:$0]  %s0, 256, %s15, [#allocation3], 128, 128, 8
    $region5: #{tpu_custom_call.1} parent=1 // pred_fallthru
      _
    // Predicated region
    $region6: #{tpu_custom_call.1} parent=1 // pred_check
      _
    $region7: #{tpu_custom_call.1} parent=1 // pred_check_branch
      %22 = sbr.rel (0) target = $region9
    $region8: #{tpu_custom_call.1} parent=1 // pred_region
      _
    $region9: #{tpu_custom_call.1} parent=1 // pred_fallthru
      _
    // Predicated region
    $region10: #{tpu_custom_call.1} parent=1 // pred_check
      _
    $region11: #{tpu_custom_call.1} parent=1 // pred_check_branch
      %24 = sbr.rel (0) target = $region13
    $region12: #{tpu_custom_call.1} parent=1 // pred_region
      %25 = dma.done [#allocation3], 256
    $region13: #{tpu_custom_call.1} parent=1 // pred_fallthru
      _
    %v26 = vld [vmem:[%s1] sm:$0x1]
    %v27 = vld [vmem:[#allocation2] sm:$0xff]
    %v28 = vld [vmem:[#allocation2 + $0x8] sm:$0xff]
    %v29 = vmul.f32 %v27, %v27
    %v30 = vmul.f32 %v28, %v28
    %vm31 = vcmask 261120
    %v32 = vsel %vm31, %v29, 0.0
    %33 = vadd.xlane.f32.xlu0 %v32
    %v34 = vpop.xlane.xlu0 %33
    %v35 = vsel %vm31, %v30, 0.0
    %36 = vadd.xlane.f32.xlu0 %v35
    %v37 = vpop.xlane.xlu0 %36
    %v38 = vrcp.pop 32.0
    %v39 = vmul.f32 %v34, %v38
    %v40 = vmul.f32 %v37, %v38
    %v41 = vadd.f32 %v39, 1e-06
    %v42 = vadd.f32 %v40, 1e-06
    %v43 = vrsqrt.pop %v41
    %v44 = vrsqrt.pop %v42
    %v45 = vmul.f32 %v27, %v43
    %v46 = vmul.f32 %v28, %v44
    %v48 = vlaneseq
    %v49 = vshrl.u32 %v48, 7
    %v50 = vsub.s32 0, %v49
    %v51 = vrot.slane %v26, %v50
    %v53 = vmul.f32 %v45, %v51
    %v54 = vmul.f32 %v46, %v51
    %55 = vst.msk [vmem:[#allocation5] sm:$0xff] %vm31, %v53
    %56 = vst.msk [vmem:[#allocation5 + $0x8] sm:$0xff] %vm31, %v54
    // Predicated region
    $region14: #{tpu_custom_call.1} parent=1 // pred_check
      _
    $region15: #{tpu_custom_call.1} parent=1 // pred_check_branch
      %58 = sbr.rel (0) target = $region17
    $region16: #{tpu_custom_call.1} parent=1 // pred_region
      %s60 = ssub.s32 256, 256
      %61 = vsyncadd [#allocation4], %s60
      %s62 = sshll.u32 [#allocation5], 4
      %s63 = int_to_ptr.vmem [resolvable:$true] %s62
      %68 = dma.vmem_to_hbm [thread:$0]  %s63, 256, %s2, [#allocation4], 128, 128, 8
    $region17: #{tpu_custom_call.1} parent=1 // pred_fallthru
      _
    // Predicated region
    $region18: #{tpu_custom_call.1} parent=1 // pred_check
      _
    $region19: #{tpu_custom_call.1} parent=1 // pred_check_branch
      %70 = sbr.rel (0) target = $region21
    $region20: #{tpu_custom_call.1} parent=1 // pred_region
      %71 = dma.done [#allocation4], 256
    $region21: #{tpu_custom_call.1} parent=1 // pred_fallthru
      _
    %72 = vsyncpa [#allocation3], 1
    %73 = vsyncpa [#allocation4], 1

</llo_original>
